<compile_context>
chip_gen: v7x
topology: tpu7x:2x2x1
jax: 0.10.0
libtpu: 0.0.40
codegen_flags: <defaults>
</compile_context>

<pallas_src>
import functools

import jax
import jax.numpy as jnp
import numpy as np
from jax.experimental import pallas as pl
from jax.experimental.pallas import tpu as pltpu


def _round_up(x, m):
    return (x + m - 1) // m * m


def _mlp_logsoftmax_kernel(x_ref, w1_ref, b1_ref, w2_ref, b2_ref, w3_ref, b3_ref,
                           *rest, n_valid, training, compute_dtype):
    """Fused 3-layer MLP + ReLU + (optional) dropout + log-softmax for one batch tile."""
    if training:
        m1_ref, m2_ref, m3_ref, o_ref = rest
    else:
        (o_ref,) = rest
    cd = compute_dtype

    # fc1 -> ReLU -> dropout
    h = jnp.dot(x_ref[...], w1_ref[...], preferred_element_type=jnp.float32)
    h = jnp.maximum(h + b1_ref[...], 0.0)
    if training:
        h = h * m1_ref[...]

    # fc2 -> ReLU -> dropout
    h = jnp.dot(h.astype(cd), w2_ref[...], preferred_element_type=jnp.float32)
    h = jnp.maximum(h + b2_ref[...], 0.0)
    if training:
        h = h * m2_ref[...]

    # fc3 -> ReLU -> dropout
    h = jnp.dot(h.astype(cd), w3_ref[...], preferred_element_type=jnp.float32)
    h = jnp.maximum(h + b3_ref[...], 0.0)
    if training:
        h = h * m3_ref[...]

    # Neutralize the lane-padding columns so they do not affect the softmax.
    if n_valid < h.shape[-1]:
        col = jax.lax.broadcasted_iota(jnp.int32, h.shape, 1)
        h = jnp.where(col < n_valid, h, jnp.float32(-1e30))

    # LogSoftmax over the feature axis (dim=1), in float32.
    m = jnp.max(h, axis=-1, keepdims=True)
    s = h - m
    lse = jnp.log(jnp.sum(jnp.exp(s), axis=-1, keepdims=True))
    o_ref[...] = (s - lse).astype(o_ref.dtype)


def make_dropout_masks(key, batch, dims, drop_prob):
    """Inverted-dropout masks, values in {0, 1/(1-p)}, one per hidden output."""
    keep = 1.0 - float(drop_prob)
    keys = jax.random.split(key, len(dims))
    return tuple(
        jax.random.bernoulli(k, keep, (batch, d)).astype(jnp.float32) / keep
        for k, d in zip(keys, dims))


def sequential_forward(x, params, *, drop_prob=0.2, training=False,
                       dropout_masks=None, rng=None, batch_tile=None,
                       compute_dtype=jnp.bfloat16):
    """Forward pass of the Sequential head.

    x: (B, n_inputs) float32.  params: dict w1,b1,w2,b2,w3,b3 with weights (in, out).
    In training mode, inverted-dropout masks may be passed explicitly
    (shapes (B,D1),(B,D2),(B,C), values {0, 1/(1-p)}) or are generated from `rng`.
    """
    x = jnp.asarray(x, jnp.float32)
    B, D0 = x.shape
    w1, b1 = params["w1"], params["b1"]
    w2, b2 = params["w2"], params["b2"]
    w3, b3 = params["w3"], params["b3"]
    D1, D2, C = w1.shape[1], w2.shape[1], w3.shape[1]

    # --- batch tiling: bounded tile so big batches pipeline & fit v7x VMEM ----
    if batch_tile is None:
        tb = min(_round_up(B, 8), 512)
    else:
        tb = _round_up(int(batch_tile), 8)
    Bp = _round_up(B, tb)

    # --- lane-dense output: pad the class dim up to a multiple of 128 ---------
    Cp = _round_up(C, 128)

    itemsize = jnp.dtype(compute_dtype).itemsize

    # Pad & cast operands (weights/x in compute_dtype, biases stay f32).
    xp = x if Bp == B else jnp.pad(x, ((0, Bp - B), (0, 0)))
    xp = xp.astype(compute_dtype)
    w1c = w1.astype(compute_dtype)
    w2c = w2.astype(compute_dtype)
    w3p = jnp.pad(w3, ((0, 0), (0, Cp - C))).astype(compute_dtype)
    b1r = b1.reshape(1, D1).astype(jnp.float32)
    b2r = b2.reshape(1, D2).astype(jnp.float32)
    b3r = jnp.pad(b3.reshape(1, C), ((0, 0), (0, Cp - C))).astype(jnp.float32)

    in_specs = [
        pl.BlockSpec((tb, D0), lambda i: (i, 0)),    # x   (batch tiled)
        pl.BlockSpec((D0, D1), lambda i: (0, 0)),    # w1
        pl.BlockSpec((1, D1), lambda i: (0, 0)),     # b1
        pl.BlockSpec((D1, D2), lambda i: (0, 0)),    # w2
        pl.BlockSpec((1, D2), lambda i: (0, 0)),     # b2
        pl.BlockSpec((D2, Cp), lambda i: (0, 0)),    # w3 (class-padded)
        pl.BlockSpec((1, Cp), lambda i: (0, 0)),     # b3 (class-padded)
    ]
    args = [xp, w1c, b1r, w2c, b2r, w3p, b3r]

    train_flag = bool(training) and drop_prob > 0.0
    mask_bytes = 0
    if train_flag:
        if not (0.0 <= drop_prob < 1.0):
            raise ValueError("drop_prob must be in [0, 1).")
        if dropout_masks is None:
            key = rng if rng is not None else jax.random.PRNGKey(0)
            dropout_masks = make_dropout_masks(key, B, (D1, D2, C), drop_prob)
        m1, m2, m3 = (m.astype(jnp.float32) for m in dropout_masks)
        m1 = jnp.pad(m1, ((0, Bp - B), (0, 0)))
        m2 = jnp.pad(m2, ((0, Bp - B), (0, 0)))
        m3 = jnp.pad(m3, ((0, Bp - B), (0, Cp - C)))
        args += [m1, m2, m3]
        in_specs += [
            pl.BlockSpec((tb, D1), lambda i: (i, 0)),
            pl.BlockSpec((tb, D2), lambda i: (i, 0)),
            pl.BlockSpec((tb, Cp), lambda i: (i, 0)),
        ]
        mask_bytes = (m1.size + m2.size + m3.size) * 4

    kernel = functools.partial(
        _mlp_logsoftmax_kernel,
        n_valid=C, training=train_flag, compute_dtype=compute_dtype)

    # VMEM budget: double-buffered batch-tiled tensors + resident weights.
    tile_bytes = 2 * tb * (D0 * itemsize + Cp * 4)
    if train_flag:
        tile_bytes += 2 * tb * (D1 + D2 + Cp) * 4
    weight_bytes = 2 * ((D0 * D1 + D1 * D2 + D2 * Cp) * itemsize
                        + (D1 + D2 + Cp) * 4)
    vmem_limit = int(min(96 * 2**20, max(32 * 2**20, 2 * (tile_bytes + weight_bytes))))

    cost = pl.CostEstimate(
        flops=2 * Bp * (D0 * D1 + D1 * D2 + D2 * Cp),
        transcendentals=Bp * (Cp + 1),
        bytes_accessed=int(xp.size * itemsize
                           + (w1c.size + w2c.size + w3p.size) * itemsize
                           + (b1r.size + b2r.size + b3r.size) * 4
                           + Bp * Cp * 4
                           + mask_bytes),
    )

    out = pl.pallas_call(
        kernel,
        out_shape=jax.ShapeDtypeStruct((Bp, Cp), jnp.float32),
        grid=(Bp // tb,),
        in_specs=in_specs,
        out_specs=pl.BlockSpec((tb, Cp), lambda i: (i, 0)),
        compiler_params=pltpu.CompilerParams(
            dimension_semantics=("parallel",),     # batch tiles are independent
            vmem_limit_bytes=vmem_limit,
        ),
        cost_estimate=cost,
    )(*args)

    return out[:B, :C]


def init_params(key, n_inputs, n_classes):
    """Layer shapes matching the PyTorch module (fc1: n->n/4, fc2: ->n/8, fc3: ->classes)."""
    d1 = n_inputs // 4
    d2 = n_inputs // 8
    ks = jax.random.split(key, 6)

    def linear(kw, kb, fan_in, fan_out):
        bound = 1.0 / np.sqrt(fan_in)
        w = jax.random.uniform(kw, (fan_in, fan_out), jnp.float32, -bound, bound)
        b = jax.random.uniform(kb, (fan_out,), jnp.float32, -bound, bound)
        return w, b

    w1, b1 = linear(ks[0], ks[1], n_inputs, d1)
    w2, b2 = linear(ks[2], ks[3], d1, d2)
    w3, b3 = linear(ks[4], ks[5], d2, n_classes)
    return {"w1": w1, "b1": b1, "w2": w2, "b2": b2, "w3": w3, "b3": b3}


def _reference_forward(x, params, *, compute_dtype=jnp.bfloat16, dropout_masks=None):
    """Pure-JAX reference that mirrors the kernel's dtype handling exactly."""
    cd = compute_dtype
    m1 = m2 = m3 = None
    if dropout_masks is not None:
        m1, m2, m3 = dropout_masks

    def layer(h, w, b, mask):
        h = jnp.dot(h.astype(cd), w.astype(cd),
                    preferred_element_type=jnp.float32) + b
        h = jnp.maximum(h, 0.0)
        if mask is not None:
            h = h * mask
        return h

    h = layer(x.astype(jnp.float32), params["w1"], params["b1"], m1)
    h = layer(h, params["w2"], params["b2"], m2)
    h = layer(h, params["w3"], params["b3"], m3)
    return jax.nn.log_softmax(h, axis=1)


if __name__ == "__main__":
    # Small shapes consistent with the module: batch=8, n_inputs=128 -> 32 -> 16 -> 10 classes.
    B, N_INPUTS, N_CLASSES = 8, 128, 10
    DROP = 0.2

    key = jax.random.PRNGKey(0)
    kx, kp, km = jax.random.split(key, 3)
    x = jax.random.normal(kx, (B, N_INPUTS), dtype=jnp.float32)
    params = init_params(kp, N_INPUTS, N_CLASSES)
    D1, D2 = params["w1"].shape[1], params["w2"].shape[1]

    # 1) Eval mode (dropout = identity), default bf16 inputs / f32 accumulation.
    out_eval = jax.block_until_ready(
        sequential_forward(x, params, drop_prob=DROP, training=False))
    ref_eval = _reference_forward(x, params, compute_dtype=jnp.bfloat16)
    np.testing.assert_allclose(np.asarray(out_eval), np.asarray(ref_eval),
                               rtol=2e-3, atol=2e-3)

    # Also sanity-check against a full-precision reference (loose tolerance,
    # covers the bf16-cast approximation of the original f32 module).
    ref_f32 = _reference_forward(x, params, compute_dtype=jnp.float32)
    np.testing.assert_allclose(np.asarray(out_eval), np.asarray(ref_f32),
                               rtol=5e-2, atol=5e-2)

    # 2) Training mode: inverted dropout with precomputed masks.
    masks = make_dropout_masks(km, B, (D1, D2, N_CLASSES), DROP)
    out_train = jax.block_until_ready(
        sequential_forward(x, params, drop_prob=DROP, training=True,
                           dropout_masks=masks))
    ref_train = _reference_forward(x, params, compute_dtype=jnp.bfloat16,
                                   dropout_masks=masks)
    assert out_train.shape == (B, N_CLASSES)
    np.testing.assert_allclose(np.asarray(out_train), np.asarray(ref_train),
                               rtol=2e-3, atol=2e-3)

    print("KERNEL_OK")
</pallas_src>

<mosaic_0001>
module attributes {stable_mosaic.version = 11 : i64} {
  func.func @_mlp_logsoftmax_kernel(%arg0: i32, %arg1: memref<8x128xbf16, #tpu.memory_space<vmem>>, %arg2: memref<128x32xbf16, #tpu.memory_space<vmem>>, %arg3: memref<1x32xf32, #tpu.memory_space<vmem>>, %arg4: memref<32x16xbf16, #tpu.memory_space<vmem>>, %arg5: memref<1x16xf32, #tpu.memory_space<vmem>>, %arg6: memref<16x128xbf16, #tpu.memory_space<vmem>>, %arg7: memref<1x128xf32, #tpu.memory_space<vmem>>, %arg8: memref<8x128xf32, #tpu.memory_space<vmem>>) attributes {dimension_semantics = [#tpu.dimension_semantics<parallel>], iteration_bounds = array<i64: 1>, scalar_prefetch = 0 : i64, scratch_operands = 0 : i64, tpu.core_type = #tpu.core_type<tc>, window_params = [{transform_indices = @transform_0, window_bounds = array<i64: 8, 128>}, {pipeline_mode = #tpu.pipeline_mode<synchronous>, transform_indices = @transform_1, window_bounds = array<i64: 128, 32>}, {pipeline_mode = #tpu.pipeline_mode<synchronous>, transform_indices = @transform_2, window_bounds = array<i64: 1, 32>}, {pipeline_mode = #tpu.pipeline_mode<synchronous>, transform_indices = @transform_3, window_bounds = array<i64: 32, 16>}, {pipeline_mode = #tpu.pipeline_mode<synchronous>, transform_indices = @transform_4, window_bounds = array<i64: 1, 16>}, {pipeline_mode = #tpu.pipeline_mode<synchronous>, transform_indices = @transform_5, window_bounds = array<i64: 16, 128>}, {pipeline_mode = #tpu.pipeline_mode<synchronous>, transform_indices = @transform_6, window_bounds = array<i64: 1, 128>}, {transform_indices = @transform_7, window_bounds = array<i64: 8, 128>}]} {
    %c0 = arith.constant 0 : index
    %c0_0 = arith.constant 0 : index
    %0 = vector.load %arg1[%c0, %c0_0] : memref<8x128xbf16, #tpu.memory_space<vmem>>, vector<8x128xbf16>
    %c0_1 = arith.constant 0 : index
    %c0_2 = arith.constant 0 : index
    %1 = vector.load %arg2[%c0_1, %c0_2] : memref<128x32xbf16, #tpu.memory_space<vmem>>, vector<128x32xbf16>
    %cst = arith.constant dense<0.000000e+00> : vector<8x32xf32>
    %2 = tpu.matmul %0, %1, %cst {dimension_numbers = #tpu.dot_dimension_numbers<[1], [0], [0], [1], [0, 0, 1, 1], [], []>} : vector<8x128xbf16>, vector<128x32xbf16>, vector<8x32xf32> -> vector<8x32xf32>
    %c0_3 = arith.constant 0 : index
    %c0_4 = arith.constant 0 : index
    %3 = vector.load %arg3[%c0_3, %c0_4] : memref<1x32xf32, #tpu.memory_space<vmem>>, vector<1x32xf32>
    %4 = vector.broadcast %3 : vector<1x32xf32> to vector<8x32xf32>
    %5 = arith.addf %2, %4 : vector<8x32xf32>
    %cst_5 = arith.constant 0.000000e+00 : f32
    %6 = vector.broadcast %cst_5 : f32 to vector<8x32xf32>
    %7 = arith.maximumf %5, %6 : vector<8x32xf32>
    %8 = arith.truncf %7 : vector<8x32xf32> to vector<8x32xbf16>
    %c0_6 = arith.constant 0 : index
    %c0_7 = arith.constant 0 : index
    %9 = vector.load %arg4[%c0_6, %c0_7] : memref<32x16xbf16, #tpu.memory_space<vmem>>, vector<32x16xbf16>
    %cst_8 = arith.constant dense<0.000000e+00> : vector<8x16xf32>
    %10 = tpu.matmul %8, %9, %cst_8 {dimension_numbers = #tpu.dot_dimension_numbers<[1], [0], [0], [1], [0, 0, 1, 1], [], []>} : vector<8x32xbf16>, vector<32x16xbf16>, vector<8x16xf32> -> vector<8x16xf32>
    %c0_9 = arith.constant 0 : index
    %c0_10 = arith.constant 0 : index
    %11 = vector.load %arg5[%c0_9, %c0_10] : memref<1x16xf32, #tpu.memory_space<vmem>>, vector<1x16xf32>
    %12 = vector.broadcast %11 : vector<1x16xf32> to vector<8x16xf32>
    %13 = arith.addf %10, %12 : vector<8x16xf32>
    %cst_11 = arith.constant 0.000000e+00 : f32
    %14 = vector.broadcast %cst_11 : f32 to vector<8x16xf32>
    %15 = arith.maximumf %13, %14 : vector<8x16xf32>
    %16 = arith.truncf %15 : vector<8x16xf32> to vector<8x16xbf16>
    %c0_12 = arith.constant 0 : index
    %c0_13 = arith.constant 0 : index
    %17 = vector.load %arg6[%c0_12, %c0_13] : memref<16x128xbf16, #tpu.memory_space<vmem>>, vector<16x128xbf16>
    %cst_14 = arith.constant dense<0.000000e+00> : vector<8x128xf32>
    %18 = tpu.matmul %16, %17, %cst_14 {dimension_numbers = #tpu.dot_dimension_numbers<[1], [0], [0], [1], [0, 0, 1, 1], [], []>} : vector<8x16xbf16>, vector<16x128xbf16>, vector<8x128xf32> -> vector<8x128xf32>
    %c0_15 = arith.constant 0 : index
    %c0_16 = arith.constant 0 : index
    %19 = vector.load %arg7[%c0_15, %c0_16] : memref<1x128xf32, #tpu.memory_space<vmem>>, vector<1x128xf32>
    %20 = vector.broadcast %19 : vector<1x128xf32> to vector<8x128xf32>
    %21 = arith.addf %18, %20 : vector<8x128xf32>
    %cst_17 = arith.constant 0.000000e+00 : f32
    %22 = vector.broadcast %cst_17 : f32 to vector<8x128xf32>
    %23 = arith.maximumf %21, %22 : vector<8x128xf32>
    %24 = tpu.iota {dimensions = array<i32: 1>} : vector<8x128xi32>
    %c10_i32 = arith.constant 10 : i32
    %25 = vector.broadcast %c10_i32 : i32 to vector<8x128xi32>
    %26 = arith.cmpi slt, %24, %25 : vector<8x128xi32>
    %cst_18 = arith.constant -1.000000e+30 : f32
    %27 = vector.broadcast %cst_18 : f32 to vector<8x128xf32>
    %28 = arith.select %26, %23, %27 : vector<8x128xi1>, vector<8x128xf32>
    %cst_19 = arith.constant dense<0xFF800000> : vector<8xf32>
    %29 = vector.multi_reduction <maximumf>, %28, %cst_19 [1] : vector<8x128xf32> to vector<8xf32>
    %30 = vector.shape_cast %29 : vector<8xf32> to vector<8x1xf32>
    %31 = vector.broadcast %30 : vector<8x1xf32> to vector<8x128xf32>
    %32 = arith.subf %28, %31 : vector<8x128xf32>
    %33 = math.exp %32 : vector<8x128xf32>
    %cst_20 = arith.constant dense<0.000000e+00> : vector<8xf32>
    %34 = vector.multi_reduction <add>, %33, %cst_20 [1] : vector<8x128xf32> to vector<8xf32>
    %35 = vector.shape_cast %34 : vector<8xf32> to vector<8x1xf32>
    %36 = math.log %35 : vector<8x1xf32>
    %37 = vector.broadcast %36 : vector<8x1xf32> to vector<8x128xf32>
    %38 = arith.subf %32, %37 : vector<8x128xf32>
    %c0_21 = arith.constant 0 : index
    %c0_22 = arith.constant 0 : index
    %39 = vector.load %arg8[%c0_21, %c0_22] : memref<8x128xf32, #tpu.memory_space<vmem>>, vector<8x128xf32>
    tpu.vector_store %arg8[%c0_21, %c0_22], %38 {strides = array<i32>} : memref<8x128xf32, #tpu.memory_space<vmem>>, vector<8x128xf32>,
    return
  }
  func.func @transform_0(%arg0: i32) -> (i32, i32) {
    %c0_i32 = arith.constant 0 : i32
    %c0_i32_0 = arith.constant 0 : i32
    return %arg0, %c0_i32 : i32, i32
  }
  func.func @transform_1(%arg0: i32) -> (i32, i32) {
    %c0_i32 = arith.constant 0 : i32
    %c0_i32_0 = arith.constant 0 : i32
    %c0_i32_1 = arith.constant 0 : i32
    return %c0_i32, %c0_i32_0 : i32, i32
  }
  func.func @transform_2(%arg0: i32) -> (i32, i32) {
    %c0_i32 = arith.constant 0 : i32
    %c0_i32_0 = arith.constant 0 : i32
    %c0_i32_1 = arith.constant 0 : i32
    return %c0_i32, %c0_i32_0 : i32, i32
  }
  func.func @transform_3(%arg0: i32) -> (i32, i32) {
    %c0_i32 = arith.constant 0 : i32
    %c0_i32_0 = arith.constant 0 : i32
    %c0_i32_1 = arith.constant 0 : i32
    return %c0_i32, %c0_i32_0 : i32, i32
  }
  func.func @transform_4(%arg0: i32) -> (i32, i32) {
    %c0_i32 = arith.constant 0 : i32
    %c0_i32_0 = arith.constant 0 : i32
    %c0_i32_1 = arith.constant 0 : i32
    return %c0_i32, %c0_i32_0 : i32, i32
  }
  func.func @transform_5(%arg0: i32) -> (i32, i32) {
    %c0_i32 = arith.constant 0 : i32
    %c0_i32_0 = arith.constant 0 : i32
    %c0_i32_1 = arith.constant 0 : i32
    return %c0_i32, %c0_i32_0 : i32, i32
  }
  func.func @transform_6(%arg0: i32) -> (i32, i32) {
    %c0_i32 = arith.constant 0 : i32
    %c0_i32_0 = arith.constant 0 : i32
    %c0_i32_1 = arith.constant 0 : i32
    return %c0_i32, %c0_i32_0 : i32, i32
  }
  func.func @transform_7(%arg0: i32) -> (i32, i32) {
    %c0_i32 = arith.constant 0 : i32
    %c0_i32_0 = arith.constant 0 : i32
    return %arg0, %c0_i32 : i32, i32
  }
}

</mosaic_0001>

<llo_original>
// kernel: tpu_custom_call.1
$region0: #{tpu_custom_call.1}
  #allocation0 [shape = 'u32[]', space=smem, size = 0x4, offset = 0x4, fixed_abs, tag = 'smem constant byte address 0x4 - core index']
  #allocation1 [shape = 'u32[144,128]{1,0:T(1,128)}', space=vmem, size = 0x12000, scoped, tag = 'internal scratch']
  %s0 = inlined_call_operand.vmem [shape: bf16[8,128], index: 0, kind: input, shape index: {}]
  %s1 = inlined_call_operand.vmem [shape: bf16[128,32], index: 1, kind: input, shape index: {}]
  %s2 = inlined_call_operand.vmem [shape: f32[1,32], index: 2, kind: input, shape index: {}]
  %s3 = inlined_call_operand.vmem [shape: bf16[32,16], index: 3, kind: input, shape index: {}]
  %s4 = inlined_call_operand.vmem [shape: f32[1,16], index: 4, kind: input, shape index: {}]
  %s5 = inlined_call_operand.vmem [shape: bf16[16,128], index: 5, kind: input, shape index: {}]
  %s6 = inlined_call_operand.vmem [shape: f32[1,128], index: 6, kind: input, shape index: {}]
  %s7 = inlined_call_operand.hbm [shape: f32[8,128], index: 7, kind: output, shape index: {}]
  %s8 = sld [smem:[#allocation0]]
  $region38: #{tpu_custom_call.1} parent=0
    _
  %s10 = ssub.s32 1, %s8
  %s11 = scalar_select 0, %s10, %s8
  $region1: #{tpu_custom_call.1} parent=0
    #allocation2 [shape = 'u8[4096]{0}', space=vmem, size = 0x1000, scoped, tag = 'output window, operand 0, single buffered']
    #allocation3 [shape = 's32[1]{0}', space=sflag, size = 0x4, scoped, tag = 'scoped memory for tpu_custom_call.1']
    %12 = vsyncpa [#allocation3], 0
    // Predicated region
    $region2: #{tpu_custom_call.1} parent=1 // pred_check
      _
    $region3: #{tpu_custom_call.1} parent=1 // pred_check_branch
      %14 = sbr.rel (0) target = $region5
    $region4: #{tpu_custom_call.1} parent=1 // pred_region
      _
    $region5: #{tpu_custom_call.1} parent=1 // pred_fallthru
      _
    // Predicated region
    $region6: #{tpu_custom_call.1} parent=1 // pred_check
      _
    $region7: #{tpu_custom_call.1} parent=1 // pred_check_branch
      %16 = sbr.rel (0) target = $region9
    $region8: #{tpu_custom_call.1} parent=1 // pred_region
      _
    $region9: #{tpu_custom_call.1} parent=1 // pred_fallthru
      _
    // Predicated region
    $region10: #{tpu_custom_call.1} parent=1 // pred_check
      _
    $region11: #{tpu_custom_call.1} parent=1 // pred_check_branch
      %18 = sbr.rel (0) target = $region13
    $region12: #{tpu_custom_call.1} parent=1 // pred_region
      _
    $region13: #{tpu_custom_call.1} parent=1 // pred_fallthru
      _
    // Predicated region
    $region14: #{tpu_custom_call.1} parent=1 // pred_check
      _
    $region15: #{tpu_custom_call.1} parent=1 // pred_check_branch
      %20 = sbr.rel (0) target = $region17
    $region16: #{tpu_custom_call.1} parent=1 // pred_region
      _
    $region17: #{tpu_custom_call.1} parent=1 // pred_fallthru
      _
    // Predicated region
    $region18: #{tpu_custom_call.1} parent=1 // pred_check
      _
    $region19: #{tpu_custom_call.1} parent=1 // pred_check_branch
      %22 = sbr.rel (0) target = $region21
    $region20: #{tpu_custom_call.1} parent=1 // pred_region
      _
    $region21: #{tpu_custom_call.1} parent=1 // pred_fallthru
      _
    // Predicated region
    $region22: #{tpu_custom_call.1} parent=1 // pred_check
      _
    $region23: #{tpu_custom_call.1} parent=1 // pred_check_branch
      %24 = sbr.rel (0) target = $region25
    $region24: #{tpu_custom_call.1} parent=1 // pred_region
      _
    $region25: #{tpu_custom_call.1} parent=1 // pred_fallthru
      _
    // Predicated region
    $region26: #{tpu_custom_call.1} parent=1 // pred_check
      _
    $region27: #{tpu_custom_call.1} parent=1 // pred_check_branch
      %26 = sbr.rel (0) target = $region29
    $region28: #{tpu_custom_call.1} parent=1 // pred_region
      _
    $region29: #{tpu_custom_call.1} parent=1 // pred_fallthru
      _
    %v28 = vld [vmem:[%s0] sm:$0xf]
    %v29 = vld [vmem:[%s1] sm:$0xf]
    %v30 = vld [vmem:[%s1 + $0x4] sm:$0xf]
    %v31 = vld [vmem:[%s1 + $0x8] sm:$0xf]
    %v32 = vld [vmem:[%s1 + $0xc] sm:$0xf]
    %v33 = vld [vmem:[%s1 + $0x10] sm:$0xf]
    %v34 = vld [vmem:[%s1 + $0x14] sm:$0xf]
    %v35 = vld [vmem:[%s1 + $0x18] sm:$0xf]
    %v36 = vld [vmem:[%s1 + $0x1c] sm:$0xf]
    %v37 = vld [vmem:[%s1 + $0x20] sm:$0xf]
    %v38 = vld [vmem:[%s1 + $0x24] sm:$0xf]
    %v39 = vld [vmem:[%s1 + $0x28] sm:$0xf]
    %v40 = vld [vmem:[%s1 + $0x2c] sm:$0xf]
    %v41 = vld [vmem:[%s1 + $0x30] sm:$0xf]
    %v42 = vld [vmem:[%s1 + $0x34] sm:$0xf]
    %v43 = vld [vmem:[%s1 + $0x38] sm:$0xf]
    %v44 = vld [vmem:[%s1 + $0x3c] sm:$0xf]
    %v45 = vld [vmem:[%s2] sm:$0x1]
    %v47 = vlaneseq
    %v48 = vshrl.u32 %v47, 7
    %v49 = vsub.s32 0, %v48
    %v50 = vrot.slane %v45, %v49
    %v68 = vunpack.c.l.b16 %v29
    %v69 = vunpack.c.l.b16 %v30
    %v70 = vunpack.c.l.b16 %v31
    %v71 = vunpack.c.l.b16 %v32
    %v72 = vunpack.c.l.b16 %v33
    %v73 = vunpack.c.l.b16 %v34
    %v74 = vunpack.c.l.b16 %v35
    %v75 = vunpack.c.l.b16 %v36
    %v76 = vunpack.c.l.b16 %v37
    %v77 = vunpack.c.l.b16 %v38
    %v78 = vunpack.c.l.b16 %v39
    %v79 = vunpack.c.l.b16 %v40
    %v80 = vunpack.c.l.b16 %v41
    %v81 = vunpack.c.l.b16 %v42
    %v82 = vunpack.c.l.b16 %v43
    %v83 = vunpack.c.l.b16 %v44
    %v84 = vpack.c.b16 %v69, %v68
    %v85 = vpack.c.b16 %v71, %v70
    %v86 = vpack.c.b16 %v73, %v72
    %v87 = vpack.c.b16 %v75, %v74
    %v88 = vpack.c.b16 %v77, %v76
    %v89 = vpack.c.b16 %v79, %v78
    %v90 = vpack.c.b16 %v81, %v80
    %v91 = vpack.c.b16 %v83, %v82
    %100 = vmatprep.subr.bf16.mxu0 0
    %101 = vmatpush1.bf16.msra.mxu0 %v84
    %102 = vmatprep.subr.bf16.mxu0 0
    %103 = vmatpush1.bf16.msra.mxu0 %v85
    %104 = vmatprep.subr.bf16.mxu0 0
    %105 = vmatpush1.bf16.msra.mxu0 %v86
    %106 = vmatprep.subr.bf16.mxu0 0
    %107 = vmatpush1.bf16.msra.mxu0 %v87
    %108 = vmatprep.subr.bf16.mxu0 0
    %109 = vmatpush1.bf16.msra.mxu0 %v88
    %110 = vmatprep.subr.bf16.mxu0 0
    %111 = vmatpush1.bf16.msra.mxu0 %v89
    %112 = vmatprep.subr.bf16.mxu0 0
    %113 = vmatpush1.bf16.msra.mxu0 %v90
    %114 = vmatprep.subr.bf16.mxu0 0
    %115 = vmatpush1.bf16.msra.mxu0 %v91
    %116 = vmatprep.subr.bf16.mxu0 0
    %117 = vmatpush1.bf16.msra.mxu0 0
    %118 = vmatprep.subr.bf16.mxu0 0
    %119 = vmatpush1.bf16.msra.mxu0 0
    %120 = vmatprep.subr.bf16.mxu0 0
    %121 = vmatpush1.bf16.msra.mxu0 0
    %122 = vmatprep.subr.bf16.mxu0 0
    %123 = vmatpush1.bf16.msra.mxu0 0
    %124 = vmatprep.subr.bf16.mxu0 0
    %125 = vmatpush1.bf16.msra.mxu0 0
    %126 = vmatprep.subr.bf16.mxu0 0
    %127 = vmatpush1.bf16.msra.mxu0 0
    %128 = vmatprep.subr.bf16.mxu0 0
    %129 = vmatpush1.bf16.msra.mxu0 0
    %130 = vmatprep.subr.bf16.mxu0 0
    %131 = vmatpush1.bf16.msra.mxu0 0
    %132 = vmatprep.mubr.bf16.mxu0 0
    %133 = vmatmul.mubr.bf16.gmra.mrb[0].mxu0 %v28
    %v134 = vpop.f32.mrb[0].mxu0
    %v135 = vadd.f32 %v50, %v134
    %v136 = vpop.f32.mrb[0].mxu0
    %v137 = vpop.f32.mrb[0].mxu0
    %v138 = vpop.f32.mrb[0].mxu0
    %139 = vdwg.mxu0
    %v140 = vmax.f32 %v135, 0.0
    %v141 = vpack.c.bf16 %v140, %v140
    %v142 = vld [vmem:[%s3] sm:$0xf]
    %v143 = vld [vmem:[%s3 + $0x4] sm:$0xf]
    %v144 = vld [vmem:[%s3 + $0x8] sm:$0xf]
    %v145 = vld [vmem:[%s3 + $0xc] sm:$0xf]
    %v146 = vld [vmem:[%s4] sm:$0x1]
    %v148 = vlaneseq
    %v149 = vshrl.u32 %v148, 7
    %v150 = vsub.s32 0, %v149
    %v151 = vrot.slane %v146, %v150
    %v157 = vunpack.c.l.b16 %v142
    %v158 = vunpack.c.l.b16 %v143
    %v159 = vunpack.c.l.b16 %v144
    %v160 = vunpack.c.l.b16 %v145
    %v161 = vpack.c.b16 %v158, %v157
    %v162 = vpack.c.b16 %v160, %v159
    %vm165 = vcmask 261120
    %v167 = vsel %vm165, %v141, 0
    %169 = vmatprep.subr.bf16.mxu0 0
    %170 = vmatpush1.bf16.msra.mxu0 %v161
    %171 = vmatprep.subr.bf16.mxu0 0
    %172 = vmatpush1.bf16.msra.mxu0 %v162
    %173 = vmatprep.subr.bf16.mxu0 0
    %174 = vmatpush1.bf16.msra.mxu0 0
    %175 = vmatprep.subr.bf16.mxu0 0
    %176 = vmatpush1.bf16.msra.mxu0 0
    %177 = vmatprep.subr.bf16.mxu0 0
    %178 = vmatpush1.bf16.msra.mxu0 0
    %179 = vmatprep.subr.bf16.mxu0 0
    %180 = vmatpush1.bf16.msra.mxu0 0
    %181 = vmatprep.subr.bf16.mxu0 0
    %182 = vmatpush1.bf16.msra.mxu0 0
    %183 = vmatprep.subr.bf16.mxu0 0
    %184 = vmatpush1.bf16.msra.mxu0 0
    %185 = vmatprep.subr.bf16.mxu0 0
    %186 = vmatpush1.bf16.msra.mxu0 0
    %187 = vmatprep.subr.bf16.mxu0 0
    %188 = vmatpush1.bf16.msra.mxu0 0
    %189 = vmatprep.subr.bf16.mxu0 0
    %190 = vmatpush1.bf16.msra.mxu0 0
    %191 = vmatprep.subr.bf16.mxu0 0
    %192 = vmatpush1.bf16.msra.mxu0 0
    %193 = vmatprep.subr.bf16.mxu0 0
    %194 = vmatpush1.bf16.msra.mxu0 0
    %195 = vmatprep.subr.bf16.mxu0 0
    %196 = vmatpush1.bf16.msra.mxu0 0
    %197 = vmatprep.subr.bf16.mxu0 0
    %198 = vmatpush1.bf16.msra.mxu0 0
    %199 = vmatprep.subr.bf16.mxu0 0
    %200 = vmatpush1.bf16.msra.mxu0 0
    %201 = vmatprep.mubr.bf16.mxu0 0
    %202 = vmatmul.mubr.bf16.gmra.mrb[0].mxu0 %v167
    %v203 = vpop.f32.mrb[0].mxu0
    %v204 = vadd.f32 %v151, %v203
    %v205 = vpop.f32.mrb[0].mxu0
    %v206 = vpop.f32.mrb[0].mxu0
    %v207 = vpop.f32.mrb[0].mxu0
    %208 = vdwg.mxu0
    %v209 = vmax.f32 %v204, 0.0
    %v210 = vpack.c.bf16 %v209, %v209
    %v211 = vld [vmem:[%s5] sm:$0xf]
    %v212 = vld [vmem:[%s5 + $0x4] sm:$0xf]
    %v213 = vld [vmem:[%s6] sm:$0x1]
    %v215 = vlaneseq
    %v216 = vshrl.u32 %v215, 7
    %v217 = vsub.s32 0, %v216
    %v218 = vrot.slane %v213, %v217
    %v222 = vunpack.c.l.b16 %v211
    %v223 = vunpack.c.l.b16 %v212
    %v224 = vpack.c.b16 %v223, %v222
    %vm226 = vcmask 130048
    %v228 = vsel %vm226, %v210, 0
    %230 = vmatprep.subr.bf16.mxu0 0
    %231 = vmatpush1.bf16.msra.mxu0 %v224
    %232 = vmatprep.subr.bf16.mxu0 0
    %233 = vmatpush1.bf16.msra.mxu0 0
    %234 = vmatprep.subr.bf16.mxu0 0
    %235 = vmatpush1.bf16.msra.mxu0 0
    %236 = vmatprep.subr.bf16.mxu0 0
    %237 = vmatpush1.bf16.msra.mxu0 0
    %238 = vmatprep.subr.bf16.mxu0 0
    %239 = vmatpush1.bf16.msra.mxu0 0
    %240 = vmatprep.subr.bf16.mxu0 0
    %241 = vmatpush1.bf16.msra.mxu0 0
    %242 = vmatprep.subr.bf16.mxu0 0
    %243 = vmatpush1.bf16.msra.mxu0 0
    %244 = vmatprep.subr.bf16.mxu0 0
    %245 = vmatpush1.bf16.msra.mxu0 0
    %246 = vmatprep.subr.bf16.mxu0 0
    %247 = vmatpush1.bf16.msra.mxu0 0
    %248 = vmatprep.subr.bf16.mxu0 0
    %249 = vmatpush1.bf16.msra.mxu0 0
    %250 = vmatprep.subr.bf16.mxu0 0
    %251 = vmatpush1.bf16.msra.mxu0 0
    %252 = vmatprep.subr.bf16.mxu0 0
    %253 = vmatpush1.bf16.msra.mxu0 0
    %254 = vmatprep.subr.bf16.mxu0 0
    %255 = vmatpush1.bf16.msra.mxu0 0
    %256 = vmatprep.subr.bf16.mxu0 0
    %257 = vmatpush1.bf16.msra.mxu0 0
    %258 = vmatprep.subr.bf16.mxu0 0
    %259 = vmatpush1.bf16.msra.mxu0 0
    %260 = vmatprep.subr.bf16.mxu0 0
    %261 = vmatpush1.bf16.msra.mxu0 0
    %262 = vmatprep.mubr.bf16.mxu0 0
    %263 = vmatmul.mubr.bf16.gmra.mrb[0].mxu0 %v228
    %v264 = vpop.f32.mrb[0].mxu0
    %v265 = vadd.f32 %v218, %v264
    %v266 = vpop.f32.mrb[0].mxu0
    %v267 = vpop.f32.mrb[0].mxu0
    %v268 = vpop.f32.mrb[0].mxu0
    %269 = vdwg.mxu0
    %v270 = vmax.f32 %v265, 0.0
    %v271 = vlaneseq
    %v272 = vand.u32 %v271, 127
    %vm273 = vcmp.lt.s32.totalorder %v272, 10
    %v274 = vsel %vm273, %v270, -1e+30
    %275 = vmax.xlane.f32.xlu0 %v274
    %v276 = vpop.xlane.xlu0 %275
    %v277 = vsub.f32 %v274, %v276
    %v278 = vmul.f32 %v277, 1.442695
    %v279 = vpow.pop %v278
    %280 = vadd.xlane.f32.xlu0 %v279
    %v281 = vpop.xlane.xlu0 %280
    %v282 = vlog2.pop %v281
    %v283 = vmul.f32 %v282, 0.6931472
    %v284 = vsub.f32 %v277, %v283
    %285 = vst [vmem:[#allocation2] sm:$0xff] %v284
    // Predicated region
    $region30: #{tpu_custom_call.1} parent=1 // pred_check
      _
    $region31: #{tpu_custom_call.1} parent=1 // pred_check_branch
      %287 = sbr.rel (0) target = $region33
    $region32: #{tpu_custom_call.1} parent=1 // pred_region
      %s289 = ssub.s32 128, 128
      %290 = vsyncadd [#allocation3], %s289
      %s292 = sshll.u32 [#allocation2], 4
      %s293 = int_to_ptr.vmem [resolvable:$true] %s292
      %295 = dma.vmem_to_hbm [thread:$0]  %s293, 128, %s7, [#allocation3]
    $region33: #{tpu_custom_call.1} parent=1 // pred_fallthru
      _
    // Predicated region
    $region34: #{tpu_custom_call.1} parent=1 // pred_check
      _
    $region35: #{tpu_custom_call.1} parent=1 // pred_check_branch
      %297 = sbr.rel (0) target = $region37
    $region36: #{tpu_custom_call.1} parent=1 // pred_region
      %298 = dma.done [#allocation3], 128
    $region37: #{tpu_custom_call.1} parent=1 // pred_fallthru
      _
    %299 = vsyncpa [#allocation3], 1

</llo_original>
